<compile_context>
chip_gen: v5e
topology: v5e:2x2
jax: 0.10.0
libtpu: 0.0.40
codegen_flags: <defaults>
</compile_context>

<pallas_src>
import functools
import math

import jax
import jax.numpy as jnp
from jax.experimental import pallas as pl
from jax.experimental.pallas import tpu as pltpu


# ---------------------------------------------------------------------------
# Tiling helpers.
# ---------------------------------------------------------------------------
def _pick_tile(dim, cap, align):
    """Pick a block size <= cap for `dim`.

    Returns (tile, padded_dim). Prefers tile == dim (single block, no
    constraint) or an `align`-multiple divisor of dim (no padding); only falls
    back to padding when the dimension is ragged w.r.t. every aligned tile.
    """
    if dim <= cap:
        return dim, dim
    t = (cap // align) * align
    while t >= align:
        if dim % t == 0:
            return t, dim
        t -= align
    t = (cap // align) * align
    return t, ((dim + t - 1) // t) * t


def _pad_to(a, shape):
    pads = [(0, t - s) for s, t in zip(a.shape, shape)]
    if any(p[1] for p in pads):
        return jnp.pad(a, pads)
    return a


# ---------------------------------------------------------------------------
# Kernel 1: positional-embedding add + LayerNorm (per batch, pos slab resident).
# ---------------------------------------------------------------------------
def _pos_ln_kernel(x_ref, pos_ref, g_ref, b_ref, o_ref, *, eps):
    s = x_ref[0].astype(jnp.float32) + pos_ref[...].astype(jnp.float32)  # (S,H)
    mean = jnp.mean(s, axis=-1, keepdims=True)
    c = s - mean
    var = jnp.mean(c * c, axis=-1, keepdims=True)
    o_ref[0] = ((c * jax.lax.rsqrt(var + eps)) * g_ref[...] + b_ref[...]).astype(
        o_ref.dtype)


def pos_layernorm(x, pos, gamma, beta, *, eps):
    """LayerNorm(x + pos) over the hidden axis. x: (B,S,H); pos: (S,H)."""
    B, S, H = x.shape
    g2 = gamma.reshape(1, H).astype(jnp.float32)
    b2 = beta.reshape(1, H).astype(jnp.float32)
    return pl.pallas_call(
        functools.partial(_pos_ln_kernel, eps=eps),
        out_shape=jax.ShapeDtypeStruct((B, S, H), x.dtype),
        grid_spec=pltpu.PrefetchScalarGridSpec(
            num_scalar_prefetch=0,
            grid=(B,),
            in_specs=[
                pl.BlockSpec((1, S, H), lambda b: (b, 0, 0)),
                pl.BlockSpec((S, H), lambda b: (0, 0)),     # resident across grid
                pl.BlockSpec((1, H), lambda b: (0, 0)),
                pl.BlockSpec((1, H), lambda b: (0, 0)),
            ],
            out_specs=pl.BlockSpec((1, S, H), lambda b: (b, 0, 0)),
        ),
        compiler_params=pltpu.CompilerParams(dimension_semantics=("parallel",)),
    )(x, pos, g2, b2)


# ---------------------------------------------------------------------------
# Kernel 2: tiled matmul + bias (+ optional gelu_new), VMEM f32 accumulator.
# Operands are fed to the MXU in their native dtype (bf16 path stays bf16).
# ---------------------------------------------------------------------------
def _linear_kernel(x_ref, w_ref, b_ref, o_ref, acc_ref, *, activation):
    @pl.when(pl.program_id(2) == 0)
    def _():
        acc_ref[...] = jnp.zeros_like(acc_ref)

    acc_ref[...] += jnp.dot(x_ref[...], w_ref[...],
                            preferred_element_type=jnp.float32)

    @pl.when(pl.program_id(2) == pl.num_programs(2) - 1)
    def _():
        y = acc_ref[...] + b_ref[...]
        if activation == "gelu_new":  # tanh-approximate GELU (ACT2FN['gelu_new'])
            y = 0.5 * y * (1.0 + jnp.tanh(
                0.7978845608028654 * (y + 0.044715 * (y * y * y))))
        o_ref[...] = y.astype(o_ref.dtype)


def linear(x, w, b, *, activation="none", tm_cap=512, tn_cap=512, tk_cap=512):
    """y = activation(x @ w + b). x: (M,K); w: (K,N); b: (N,)."""
    M, K = x.shape
    _, N = w.shape
    if w.dtype != x.dtype:
        w = w.astype(x.dtype)          # keep MXU operands in activation dtype
    tm, Mp = _pick_tile(M, tm_cap, 8)
    tk, Kp = _pick_tile(K, tk_cap, 128)
    tn, Np = _pick_tile(N, tn_cap, 128)
    xp = _pad_to(x, (Mp, Kp))
    wp = _pad_to(w, (Kp, Np))
    bp = _pad_to(b.reshape(1, N).astype(jnp.float32), (1, Np))

    out = pl.pallas_call(
        functools.partial(_linear_kernel, activation=activation),
        out_shape=jax.ShapeDtypeStruct((Mp, Np), x.dtype),
        grid_spec=pltpu.PrefetchScalarGridSpec(
            num_scalar_prefetch=0,
            grid=(Mp // tm, Np // tn, Kp // tk),
            in_specs=[
                pl.BlockSpec((tm, tk), lambda i, j, k: (i, k)),
                pl.BlockSpec((tk, tn), lambda i, j, k: (k, j)),
                pl.BlockSpec((1, tn), lambda i, j, k: (0, j)),
            ],
            out_specs=pl.BlockSpec((tm, tn), lambda i, j, k: (i, j)),
            scratch_shapes=[pltpu.VMEM((tm, tn), jnp.float32)],
        ),
        compiler_params=pltpu.CompilerParams(
            dimension_semantics=("parallel", "parallel", "arbitrary")),
    )(xp, wp, bp)
    if (Mp, Np) != (M, N):
        out = out[:M, :N]
    return out


# ---------------------------------------------------------------------------
# Kernel 3: tiled matmul + bias + residual-add + LayerNorm fused epilogue.
# Requires the full output width N (= hidden size) per block so LN sees whole rows.
# ---------------------------------------------------------------------------
def _linear_res_ln_kernel(x_ref, w_ref, b_ref, res_ref, g_ref, beta_ref,
                          o_ref, acc_ref, *, eps):
    @pl.when(pl.program_id(1) == 0)
    def _():
        acc_ref[...] = jnp.zeros_like(acc_ref)

    acc_ref[...] += jnp.dot(x_ref[...], w_ref[...],
                            preferred_element_type=jnp.float32)

    @pl.when(pl.program_id(1) == pl.num_programs(1) - 1)
    def _():
        s = acc_ref[...] + b_ref[...] + res_ref[...].astype(jnp.float32)
        mean = jnp.mean(s, axis=-1, keepdims=True)
        c = s - mean
        var = jnp.mean(c * c, axis=-1, keepdims=True)
        o_ref[...] = ((c * jax.lax.rsqrt(var + eps)) * g_ref[...]
                      + beta_ref[...]).astype(o_ref.dtype)


def linear_residual_layernorm(x, w, b, res, gamma, beta, *, eps,
                              tm_cap=256, tk_cap=512):
    """LayerNorm(x @ w + b + res). x: (M,K); w: (K,N); res: (M,N)."""
    M, K = x.shape
    _, N = w.shape
    if w.dtype != x.dtype:
        w = w.astype(x.dtype)
    tm, Mp = _pick_tile(M, tm_cap, 8)
    tk, Kp = _pick_tile(K, tk_cap, 128)
    xp = _pad_to(x, (Mp, Kp))
    wp = _pad_to(w, (Kp, N))
    resp = _pad_to(res, (Mp, N))
    b2 = b.reshape(1, N).astype(jnp.float32)
    g2 = gamma.reshape(1, N).astype(jnp.float32)
    beta2 = beta.reshape(1, N).astype(jnp.float32)

    out = pl.pallas_call(
        functools.partial(_linear_res_ln_kernel, eps=eps),
        out_shape=jax.ShapeDtypeStruct((Mp, N), x.dtype),
        grid_spec=pltpu.PrefetchScalarGridSpec(
            num_scalar_prefetch=0,
            grid=(Mp // tm, Kp // tk),
            in_specs=[
                pl.BlockSpec((tm, tk), lambda i, k: (i, k)),
                pl.BlockSpec((tk, N), lambda i, k: (k, 0)),
                pl.BlockSpec((1, N), lambda i, k: (0, 0)),
                pl.BlockSpec((tm, N), lambda i, k: (i, 0)),   # residual, k-invariant
                pl.BlockSpec((1, N), lambda i, k: (0, 0)),
                pl.BlockSpec((1, N), lambda i, k: (0, 0)),
            ],
            out_specs=pl.BlockSpec((tm, N), lambda i, k: (i, 0)),
            scratch_shapes=[pltpu.VMEM((tm, N), jnp.float32)],
        ),
        compiler_params=pltpu.CompilerParams(
            dimension_semantics=("parallel", "arbitrary")),
    )(xp, wp, b2, resp, g2, beta2)
    if Mp != M:
        out = out[:M]
    return out


# ---------------------------------------------------------------------------
# Kernel 4: multi-head self-attention with lane-dense (S, 3H) in / (S, H) out.
# Heads are split with static slices inside the kernel; the head loop keeps the
# output store a single unmasked (S, H) block instead of nH masked dh-wide ones.
# ---------------------------------------------------------------------------
def _attention_kernel(qkv_ref, bias_ref, o_ref, *, num_heads, head_dim, scale):
    H = num_heads * head_dim
    qkv = qkv_ref[0]                              # (S, 3H), native dtype
    bias = bias_ref[0].astype(jnp.float32)        # (1, S) additive key mask
    q_all = qkv[:, :H] * scale                    # fold 1/sqrt(dh) into q (one VPU pass)

    ctxs = []
    for h in range(num_heads):
        lo, hi = h * head_dim, (h + 1) * head_dim
        q = q_all[:, lo:hi]
        k = qkv[:, H + lo:H + hi]
        v = qkv[:, 2 * H + lo:2 * H + hi]
        s = jax.lax.dot_general(q, k, (((1,), (1,)), ((), ())),
                                preferred_element_type=jnp.float32)   # (S, S)
        s = s + bias
        m = jnp.max(s, axis=-1, keepdims=True)
        e = jnp.exp(s - m)
        p = e * pl.reciprocal(jnp.sum(e, axis=-1, keepdims=True), approx=True)
        ctxs.append(jnp.dot(p.astype(v.dtype), v,
                            preferred_element_type=jnp.float32))      # (S, dh)
    o_ref[0] = jnp.concatenate(ctxs, axis=-1).astype(o_ref.dtype)


def multi_head_attention(qkv, bias, *, num_heads, scale):
    """qkv: (B, S, 3H) fused projections; bias: (B, 1, S) additive key mask."""
    B, S, H3 = qkv.shape
    H = H3 // 3
    dh = H // num_heads
    return pl.pallas_call(
        functools.partial(_attention_kernel, num_heads=num_heads,
                          head_dim=dh, scale=scale),
        out_shape=jax.ShapeDtypeStruct((B, S, H), qkv.dtype),
        grid_spec=pltpu.PrefetchScalarGridSpec(
            num_scalar_prefetch=0,
            grid=(B,),
            in_specs=[
                pl.BlockSpec((1, S, H3), lambda b: (b, 0, 0)),
                pl.BlockSpec((1, 1, S), lambda b: (b, 0, 0)),
            ],
            out_specs=pl.BlockSpec((1, S, H), lambda b: (b, 0, 0)),
        ),
        compiler_params=pltpu.CompilerParams(dimension_semantics=("parallel",)),
    )(qkv, bias)


# ---------------------------------------------------------------------------
# Full TransEncoder forward (eval mode).
# ---------------------------------------------------------------------------
def trans_encoder_forward(x, lengths, params, *, num_heads, eps):
    B, S, H = x.shape
    dh = H // num_heads
    rows = B * S
    scale = 1.0 / math.sqrt(dh)

    # make_mask + extended attention mask: (1 - mask) * -10000, shape (B,1,S).
    mask = jnp.arange(S)[None, :] < lengths[:, None]
    bias = jnp.where(mask, 0.0, -10000.0).astype(jnp.float32).reshape(B, 1, S)

    # PositionalEncoding: learned pos-emb add + LayerNorm (Dropout = identity).
    h = pos_layernorm(x, params["pos_emb"][:S],
                      params["pos_ln_g"], params["pos_ln_b"], eps=eps)
    h = h.reshape(rows, H)                                   # free reshape

    for lp in params["layers"]:
        # Fused Q/K/V projection (single matmul over concatenated weights).
        qkv = linear(h, lp["w_qkv"], lp["b_qkv"])            # (rows, 3H)

        # Attention on lane-dense (B, S, 3H) blocks, context out as (B, S, H).
        ctx = multi_head_attention(qkv.reshape(B, S, 3 * H), bias,
                                   num_heads=num_heads, scale=scale)

        # BertSelfOutput: dense + residual + LayerNorm (fused epilogue).
        attn_out = linear_residual_layernorm(
            ctx.reshape(rows, H), lp["w_ao"], lp["b_ao"], h,
            lp["ln1_g"], lp["ln1_b"], eps=eps)

        # BertIntermediate (gelu_new) + BertOutput (dense + residual + LN fused).
        inter = linear(attn_out, lp["w_i"], lp["b_i"], activation="gelu_new")
        h = linear_residual_layernorm(
            inter, lp["w_f"], lp["b_f"], attn_out,
            lp["ln2_g"], lp["ln2_b"], eps=eps)

    return h.reshape(B, S, H)


# ---------------------------------------------------------------------------
# Pure-JAX reference (same math, no Pallas) for correctness checking.
# ---------------------------------------------------------------------------
def _gelu_new(x):
    return 0.5 * x * (1.0 + jnp.tanh(0.7978845608028654 * (x + 0.044715 * x ** 3)))


def reference_forward(x, lengths, params, *, num_heads, eps):
    B, S, H = x.shape
    dh = H // num_heads
    mask = (jnp.arange(S)[None, :] < lengths[:, None]).astype(jnp.float32)
    bias = ((1.0 - mask) * -10000.0)[:, None, None, :]

    def ln(v, g, b):
        mu = jnp.mean(v, -1, keepdims=True)
        var = jnp.mean((v - mu) ** 2, -1, keepdims=True)
        return (v - mu) / jnp.sqrt(var + eps) * g + b

    h = ln(x + params["pos_emb"][:S][None], params["pos_ln_g"], params["pos_ln_b"])
    for lp in params["layers"]:
        qkv = (h @ lp["w_qkv"] + lp["b_qkv"]).reshape(B, S, 3, num_heads, dh)
        q = qkv[:, :, 0].transpose(0, 2, 1, 3)
        k = qkv[:, :, 1].transpose(0, 2, 1, 3)
        v = qkv[:, :, 2].transpose(0, 2, 1, 3)
        s = jnp.einsum("bhqd,bhkd->bhqk", q, k) / math.sqrt(dh) + bias
        p = jax.nn.softmax(s, axis=-1)
        ctx = jnp.einsum("bhqk,bhkd->bhqd", p, v)
        ctx = ctx.transpose(0, 2, 1, 3).reshape(B, S, H)
        a = ln(ctx @ lp["w_ao"] + lp["b_ao"] + h, lp["ln1_g"], lp["ln1_b"])
        inter = _gelu_new(a @ lp["w_i"] + lp["b_i"])
        h = ln(inter @ lp["w_f"] + lp["b_f"] + a, lp["ln2_g"], lp["ln2_b"])
    return h


if __name__ == "__main__":
    # Small config consistent with the module: hidden_size=32, 4 heads,
    # intermediate_size=64, 2 layers, max_position_embeddings=16,
    # layer_norm_eps=1e-12, hidden_act='gelu_new', initializer_range=0.02.
    B, S = 2, 8
    H, N_HEADS, I_SIZE, N_LAYERS, MAX_POS = 32, 4, 64, 2, 16
    EPS = 1e-12
    INIT = 0.02

    key = jax.random.PRNGKey(0)
    key, kx, kpos = jax.random.split(key, 3)
    x = jax.random.normal(kx, (B, S, H), dtype=jnp.float32)
    lengths = jnp.array([8, 5], dtype=jnp.int32)

    def dense_init(k, shape):
        return (INIT * jax.random.normal(k, shape)).astype(jnp.float32)

    params = {
        "pos_emb": dense_init(kpos, (MAX_POS, H)),
        "pos_ln_g": jnp.ones((H,), jnp.float32),
        "pos_ln_b": jnp.zeros((H,), jnp.float32),
        "layers": [],
    }
    for _ in range(N_LAYERS):
        key, kq, kk, kv, ko, ki, kf = jax.random.split(key, 7)
        wq, wk, wv = (dense_init(kq, (H, H)), dense_init(kk, (H, H)),
                      dense_init(kv, (H, H)))
        params["layers"].append({
            # weights stored as (in_features, out_features); q|k|v fused on out axis
            "w_qkv": jnp.concatenate([wq, wk, wv], axis=1),
            "b_qkv": jnp.zeros((3 * H,), jnp.float32),
            "w_ao": dense_init(ko, (H, H)), "b_ao": jnp.zeros((H,), jnp.float32),
            "ln1_g": jnp.ones((H,), jnp.float32), "ln1_b": jnp.zeros((H,), jnp.float32),
            "w_i": dense_init(ki, (H, I_SIZE)), "b_i": jnp.zeros((I_SIZE,), jnp.float32),
            "w_f": dense_init(kf, (I_SIZE, H)), "b_f": jnp.zeros((H,), jnp.float32),
            "ln2_g": jnp.ones((H,), jnp.float32), "ln2_b": jnp.zeros((H,), jnp.float32),
        })

    out = trans_encoder_forward(x, lengths, params, num_heads=N_HEADS, eps=EPS)
    out = jax.block_until_ready(out)
    assert out.shape == (B, S, H)

    ref = reference_forward(x, lengths, params, num_heads=N_HEADS, eps=EPS)
    # Tolerance absorbs MXU default-precision differences and the approximate
    # EUP reciprocal used in the softmax normalization.
    assert jnp.allclose(out, ref, atol=1e-2, rtol=1e-2), (
        "mismatch vs reference, max abs diff = %e"
        % float(jnp.max(jnp.abs(out - ref))))

    # bf16 activation path: activations and weight tiles reach the MXU as bf16
    # (f32 accumulation), halving HBM traffic; LN/epilogue math stays f32.
    out_bf16 = trans_encoder_forward(x.astype(jnp.bfloat16), lengths, params,
                                     num_heads=N_HEADS, eps=EPS)
    jax.block_until_ready(out_bf16)

    print("KERNEL_OK")
</pallas_src>

<mosaic_0001>
module attributes {stable_mosaic.version = 11 : i64} {
  func.func @_pos_ln_kernel(%arg0: i32, %arg1: memref<1x8x32xf32, #tpu.memory_space<vmem>>, %arg2: memref<8x32xf32, #tpu.memory_space<vmem>>, %arg3: memref<1x32xf32, #tpu.memory_space<vmem>>, %arg4: memref<1x32xf32, #tpu.memory_space<vmem>>, %arg5: memref<1x8x32xf32, #tpu.memory_space<vmem>>) attributes {dimension_semantics = [#tpu.dimension_semantics<parallel>], iteration_bounds = array<i64: 2>, scalar_prefetch = 0 : i64, scratch_operands = 0 : i64, tpu.core_type = #tpu.core_type<tc>, window_params = [{transform_indices = @transform_0, window_bounds = array<i64: 1, 8, 32>}, {pipeline_mode = #tpu.pipeline_mode<synchronous>, transform_indices = @transform_1, window_bounds = array<i64: 8, 32>}, {pipeline_mode = #tpu.pipeline_mode<synchronous>, transform_indices = @transform_2, window_bounds = array<i64: 1, 32>}, {pipeline_mode = #tpu.pipeline_mode<synchronous>, transform_indices = @transform_3, window_bounds = array<i64: 1, 32>}, {transform_indices = @transform_4, window_bounds = array<i64: 1, 8, 32>}]} {
    %c0 = arith.constant 0 : index
    %c0_0 = arith.constant 0 : index
    %c0_1 = arith.constant 0 : index
    %0 = vector.load %arg1[%c0, %c0_0, %c0_1] : memref<1x8x32xf32, #tpu.memory_space<vmem>>, vector<1x8x32xf32>
    %1 = vector.shape_cast %0 : vector<1x8x32xf32> to vector<8x32xf32>
    %c0_2 = arith.constant 0 : index
    %c0_3 = arith.constant 0 : index
    %2 = vector.load %arg2[%c0_2, %c0_3] : memref<8x32xf32, #tpu.memory_space<vmem>>, vector<8x32xf32>
    %3 = arith.addf %1, %2 : vector<8x32xf32>
    %cst = arith.constant dense<0.000000e+00> : vector<8xf32>
    %4 = vector.multi_reduction <add>, %3, %cst [1] : vector<8x32xf32> to vector<8xf32>
    %5 = vector.shape_cast %4 : vector<8xf32> to vector<8x1xf32>
    %cst_4 = arith.constant 3.200000e+01 : f32
    %6 = vector.broadcast %cst_4 : f32 to vector<8x1xf32>
    %7 = arith.divf %5, %6 : vector<8x1xf32>
    %8 = vector.broadcast %7 : vector<8x1xf32> to vector<8x32xf32>
    %9 = arith.subf %3, %8 : vector<8x32xf32>
    %10 = arith.mulf %9, %9 : vector<8x32xf32>
    %cst_5 = arith.constant dense<0.000000e+00> : vector<8xf32>
    %11 = vector.multi_reduction <add>, %10, %cst_5 [1] : vector<8x32xf32> to vector<8xf32>
    %12 = vector.shape_cast %11 : vector<8xf32> to vector<8x1xf32>
    %cst_6 = arith.constant 3.200000e+01 : f32
    %13 = vector.broadcast %cst_6 : f32 to vector<8x1xf32>
    %14 = arith.divf %12, %13 : vector<8x1xf32>
    %cst_7 = arith.constant 9.99999996E-13 : f32
    %15 = vector.broadcast %cst_7 : f32 to vector<8x1xf32>
    %16 = arith.addf %14, %15 : vector<8x1xf32>
    %17 = math.rsqrt %16 : vector<8x1xf32>
    %18 = vector.broadcast %17 : vector<8x1xf32> to vector<8x32xf32>
    %19 = arith.mulf %9, %18 : vector<8x32xf32>
    %c0_8 = arith.constant 0 : index
    %c0_9 = arith.constant 0 : index
    %20 = vector.load %arg3[%c0_8, %c0_9] : memref<1x32xf32, #tpu.memory_space<vmem>>, vector<1x32xf32>
    %21 = vector.broadcast %20 : vector<1x32xf32> to vector<8x32xf32>
    %22 = arith.mulf %19, %21 : vector<8x32xf32>
    %c0_10 = arith.constant 0 : index
    %c0_11 = arith.constant 0 : index
    %23 = vector.load %arg4[%c0_10, %c0_11] : memref<1x32xf32, #tpu.memory_space<vmem>>, vector<1x32xf32>
    %24 = vector.broadcast %23 : vector<1x32xf32> to vector<8x32xf32>
    %25 = arith.addf %22, %24 : vector<8x32xf32>
    %c0_12 = arith.constant 0 : index
    %c0_13 = arith.constant 0 : index
    %c0_14 = arith.constant 0 : index
    %26 = vector.load %arg5[%c0_12, %c0_13, %c0_14] : memref<1x8x32xf32, #tpu.memory_space<vmem>>, vector<1x8x32xf32>
    %27 = vector.shape_cast %26 : vector<1x8x32xf32> to vector<8x32xf32>
    %28 = vector.shape_cast %25 : vector<8x32xf32> to vector<1x8x32xf32>
    tpu.vector_store %arg5[%c0_12, %c0_13, %c0_14], %28 {strides = array<i32>} : memref<1x8x32xf32, #tpu.memory_space<vmem>>, vector<1x8x32xf32>,
    return
  }
  func.func @transform_0(%arg0: i32) -> (i32, i32, i32) {
    %c0_i32 = arith.constant 0 : i32
    %c0_i32_0 = arith.constant 0 : i32
    %c0_i32_1 = arith.constant 0 : i32
    return %arg0, %c0_i32, %c0_i32_0 : i32, i32, i32
  }
  func.func @transform_1(%arg0: i32) -> (i32, i32) {
    %c0_i32 = arith.constant 0 : i32
    %c0_i32_0 = arith.constant 0 : i32
    %c0_i32_1 = arith.constant 0 : i32
    return %c0_i32, %c0_i32_0 : i32, i32
  }
  func.func @transform_2(%arg0: i32) -> (i32, i32) {
    %c0_i32 = arith.constant 0 : i32
    %c0_i32_0 = arith.constant 0 : i32
    %c0_i32_1 = arith.constant 0 : i32
    return %c0_i32, %c0_i32_0 : i32, i32
  }
  func.func @transform_3(%arg0: i32) -> (i32, i32) {
    %c0_i32 = arith.constant 0 : i32
    %c0_i32_0 = arith.constant 0 : i32
    %c0_i32_1 = arith.constant 0 : i32
    return %c0_i32, %c0_i32_0 : i32, i32
  }
  func.func @transform_4(%arg0: i32) -> (i32, i32, i32) {
    %c0_i32 = arith.constant 0 : i32
    %c0_i32_0 = arith.constant 0 : i32
    %c0_i32_1 = arith.constant 0 : i32
    return %arg0, %c0_i32, %c0_i32_0 : i32, i32, i32
  }
}

</mosaic_0001>

<llo_original>
// kernel: tpu_custom_call.1
$region0: #{tpu_custom_call.1}
  #allocation0 [shape = 'u32[]', space=smem, size = 0x4, offset = 0x4, fixed_abs, tag = 'smem constant byte address 0x4 - core index']
  #allocation1 [shape = 'u32[72,128]{1,0:T(1,128)}', space=vmem, size = 0x9000, scoped, tag = 'internal scratch']
  %s0 = inlined_call_operand.hbm [shape: f32[2,8,32], index: 0, kind: input, shape index: {}]
  %s1 = inlined_call_operand.hbm [shape: f32[8,32], index: 1, kind: input, shape index: {}]
  %s2 = inlined_call_operand.vmem [shape: f32[1,32], index: 2, kind: input, shape index: {}]
  %s3 = inlined_call_operand.vmem [shape: f32[1,32], index: 3, kind: input, shape index: {}]
  %s4 = inlined_call_operand.hbm [shape: f32[2,8,32], index: 4, kind: output, shape index: {}]
  %s5 = sld [smem:[#allocation0]]
  $region57: #{tpu_custom_call.1} parent=0
    _
  %s7 = ssub.s32 1, %s5
  %s8 = scalar_select 0, %s7, %s5
  $region1: #{tpu_custom_call.1} parent=0
    #allocation2 [shape = 'u8[8192]{0}', space=vmem, size = 0x2000, scoped, tag = 'input window, operand 0']
    #allocation3 [shape = 's32[2]{0}', space=sflag, size = 0x8, scoped, tag = 'scoped memory for tpu_custom_call.1']
    #allocation4 [shape = 's32[2]{0}', space=sflag, size = 0x8, scoped, tag = 'scoped memory for tpu_custom_call.1']
    #allocation5 [shape = 'u8[4096]{0}', space=vmem, size = 0x1000, scoped, tag = 'input window, operand 1, single buffered']
    #allocation6 [shape = 's32[1]{0}', space=sflag, size = 0x4, scoped, tag = 'scoped memory for tpu_custom_call.1']
    #allocation7 [shape = 'u8[8192]{0}', space=vmem, size = 0x2000, scoped, tag = 'output window, operand 0']
    %9 = vsyncpa [#allocation3], 0
    %s10 = scalar_lea.sflag [#allocation3], 1
    %11 = vsyncpa %s10, 0
    %12 = vsyncpa [#allocation6], 0
    %13 = vsyncpa [#allocation4], 0
    %s14 = scalar_lea.sflag [#allocation4], 1
    %15 = vsyncpa %s14, 0
    loop: start=0, step=1, limit=4
    $region2: #{tpu_custom_call.1} parent=1 // loop_pre_header
      _
    $region3: #{tpu_custom_call.1} parent=1 // loop_header
      %s17 = sphi 0, %s21
      %p18 = scmp.ge.s32.totalorder %s17, 4
      %s27 = sphi 0, %s29
      %s30 = sphi 0, %s27
      %s31 = sphi 0, %s30
      %s47 = sphi 0, %s31
      %s51 = sphi 0, %s51
      %s53 = sphi 0, %s51
      %s54 = sphi 0, %s53
      %s68 = sphi 0, %s54
      %s72 = sphi 0, %s72
      %s74 = sphi 0, %s72
      %s75 = sphi 0, %s74
      %s89 = sphi 0, %s75
      %s93 = sphi 0, %s93
      %s95 = sphi 0, %s93
      %s96 = sphi 0, %s95
      %s110 = sphi 0, %s96
      %s116 = sphi 0, %s118
      %s119 = sphi 0, %s116
      %s120 = sphi 0, %s119
      %s136 = sphi 0, %s120
    $region4: #{tpu_custom_call.1} parent=1 // loop_header_branch
      %20 = sbr.rel (%p18) target = $region8
    $region5: #{tpu_custom_call.1} parent=1 // loop_body
      %s22 = ssub.s32 %s17, 1
      %s23 = ssub.s32 %s17, 2
      %s24 = sadd.s32 %s17, 1
      %s25 = ssub.s32 %s17, %s24
      %p26 = scmp.eq.s32.totalorder %s25, 0
      %s28 = sadd.s32 %s27, 1
      %s29 = scalar_select %p26, %s27, %s28
      %p32 = pneg %p26
      %p33 = scmp.eq.s32.totalorder %s17, 1
      %p34 = por %p32, %p33
      %p35 = scmp.ne.s32.totalorder %s27, %s30
      %p36 = scmp.eq.s32.totalorder %s17, 0
      %p37 = por %p35, %p36
      %p38 = scmp.ne.s32.totalorder %s27, %s30
      %p39 = scmp.eq.s32.totalorder %s22, 1
      %p40 = por %p38, %p39
      %p41 = scmp.ne.s32.totalorder %s30, %s31
      %p42 = scmp.eq.s32.totalorder %s22, 0
      %p43 = por %p41, %p42
      %p44 = scmp.ne.s32.totalorder %s30, %s31
      %p45 = scmp.eq.s32.totalorder %s23, 1
      %p46 = por %p44, %p45
      %p48 = scmp.ne.s32.totalorder %s31, %s47
      %p49 = scmp.eq.s32.totalorder %s23, 0
      %p50 = por %p48, %p49
      %s52 = sadd.s32 %s51, 1
      %p55 = scmp.eq.s32.totalorder %s17, 1
      %p56 = scmp.ne.s32.totalorder %s51, %s53
      %p57 = scmp.eq.s32.totalorder %s17, 0
      %p58 = por %p56, %p57
      %p59 = scmp.ne.s32.totalorder %s51, %s53
      %p60 = scmp.eq.s32.totalorder %s22, 1
      %p61 = por %p59, %p60
      %p62 = scmp.ne.s32.totalorder %s53, %s54
      %p63 = scmp.eq.s32.totalorder %s22, 0
      %p64 = por %p62, %p63
      %p65 = scmp.ne.s32.totalorder %s53, %s54
      %p66 = scmp.eq.s32.totalorder %s23, 1
      %p67 = por %p65, %p66
      %p69 = scmp.ne.s32.totalorder %s54, %s68
      %p70 = scmp.eq.s32.totalorder %s23, 0
      %p71 = por %p69, %p70
      %s73 = sadd.s32 %s72, 1
      %p76 = scmp.eq.s32.totalorder %s17, 1
      %p77 = scmp.ne.s32.totalorder %s72, %s74
      %p78 = scmp.eq.s32.totalorder %s17, 0
      %p79 = por %p77, %p78
      %p80 = scmp.ne.s32.totalorder %s72, %s74
      %p81 = scmp.eq.s32.totalorder %s22, 1
      %p82 = por %p80, %p81
      %p83 = scmp.ne.s32.totalorder %s74, %s75
      %p84 = scmp.eq.s32.totalorder %s22, 0
      %p85 = por %p83, %p84
      %p86 = scmp.ne.s32.totalorder %s74, %s75
      %p87 = scmp.eq.s32.totalorder %s23, 1
      %p88 = por %p86, %p87
      %p90 = scmp.ne.s32.totalorder %s75, %s89
      %p91 = scmp.eq.s32.totalorder %s23, 0
      %p92 = por %p90, %p91
      %s94 = sadd.s32 %s93, 1
      %p97 = scmp.eq.s32.totalorder %s17, 1
      %p98 = scmp.ne.s32.totalorder %s93, %s95
      %p99 = scmp.eq.s32.totalorder %s17, 0
      %p100 = por %p98, %p99
      %p101 = scmp.ne.s32.totalorder %s93, %s95
      %p102 = scmp.eq.s32.totalorder %s22, 1
      %p103 = por %p101, %p102
      %p104 = scmp.ne.s32.totalorder %s95, %s96
      %p105 = scmp.eq.s32.totalorder %s22, 0
      %p106 = por %p104, %p105
      %p107 = scmp.ne.s32.totalorder %s95, %s96
      %p108 = scmp.eq.s32.totalorder %s23, 1
      %p109 = por %p107, %p108
      %p111 = scmp.ne.s32.totalorder %s96, %s110
      %p112 = scmp.eq.s32.totalorder %s23, 0
      %p113 = por %p111, %p112
      %s114 = ssub.s32 %s17, %s24
      %p115 = scmp.eq.s32.totalorder %s114, 0
      %s117 = sadd.s32 %s116, 1
      %s118 = scalar_select %p115, %s116, %s117
      %p121 = pneg %p115
      %p122 = scmp.eq.s32.totalorder %s17, 1
      %p123 = por %p121, %p122
      %p124 = scmp.ne.s32.totalorder %s116, %s119
      %p125 = scmp.eq.s32.totalorder %s17, 0
      %p126 = por %p124, %p125
      %p127 = scmp.ne.s32.totalorder %s116, %s119
      %p128 = scmp.eq.s32.totalorder %s22, 1
      %p129 = por %p127, %p128
      %p130 = scmp.ne.s32.totalorder %s119, %s120
      %p131 = scmp.eq.s32.totalorder %s22, 0
      %p132 = por %p130, %p131
      %p133 = scmp.ne.s32.totalorder %s119, %s120
      %p134 = scmp.eq.s32.totalorder %s23, 1
      %p135 = por %p133, %p134
      %p137 = scmp.ne.s32.totalorder %s120, %s136
      %p138 = scmp.eq.s32.totalorder %s23, 0
      %p139 = por %p137, %p138
      %p140 = scmp.le.s32.totalorder 1, %s17
      %p141 = scmp.lt.s32.totalorder %s17, 3
      %p142 = pnand %p140, %p141
      %p143 = pneg %p142
      // Predicated region
      $region9: #{tpu_custom_call.1} parent=5 // pred_check
        _
      $region10: #{tpu_custom_call.1} parent=5 // pred_check_branch
        %145 = sbr.rel (%p142) target = $region12
      $region11: #{tpu_custom_call.1} parent=5 // pred_region
        %s146 = ssub.s32 %s17, 1
        // Predicated region
        $region13: #{tpu_custom_call.1} parent=11 // pred_check
          %p147 = pneg %p64
        $region14: #{tpu_custom_call.1} parent=11 // pred_check_branch
          %149 = sbr.rel (%p147) target = $region16
        $region15: #{tpu_custom_call.1} parent=11 // pred_region
          %151 = vsyncadd [#allocation6], 0
          %s153 = sshll.u32 %s1, 4
          %s154 = int_to_ptr.hbm [resolvable:$true] %s153
          %s155 = sshll.u32 [#allocation5], 4
          %s156 = int_to_ptr.vmem [resolvable:$true] %s155
          %158 = dma.hbm_to_vmem [thread:$0]  %s154, 128, %s156, [#allocation6]
        $region16: #{tpu_custom_call.1} parent=11 // pred_fallthru
          _
        // Predicated region
        $region17: #{tpu_custom_call.1} parent=11 // pred_check
          %p159 = pneg %p85
        $region18: #{tpu_custom_call.1} parent=11 // pred_check_branch
          %161 = sbr.rel (%p159) target = $region20
        $region19: #{tpu_custom_call.1} parent=11 // pred_region
          _
        $region20: #{tpu_custom_call.1} parent=11 // pred_fallthru
          _
        // Predicated region
        $region21: #{tpu_custom_call.1} parent=11 // pred_check
          %p162 = pneg %p106
        $region22: #{tpu_custom_call.1} parent=11 // pred_check_branch
          %164 = sbr.rel (%p162) target = $region24
        $region23: #{tpu_custom_call.1} parent=11 // pred_region
          _
        $region24: #{tpu_custom_call.1} parent=11 // pred_fallthru
          _
      $region12: #{tpu_custom_call.1} parent=5 // pred_fallthru
        _
      %p165 = scmp.lt.s32.totalorder %s17, 2
      // Predicated region
      $region25: #{tpu_custom_call.1} parent=5 // pred_check
        %p166 = pneg %p165
      $region26: #{tpu_custom_call.1} parent=5 // pred_check_branch
        %168 = sbr.rel (%p166) target = $region28
      $region27: #{tpu_custom_call.1} parent=5 // pred_region
        // Predicated region
        $region29: #{tpu_custom_call.1} parent=27 // pred_check
          %p169 = pneg %p37
        $region30: #{tpu_custom_call.1} parent=27 // pred_check_branch
          %171 = sbr.rel (%p169) target = $region32
        $region31: #{tpu_custom_call.1} parent=27 // pred_region
          %s172 = sand.u32 %s27, 1
          %s173 = scalar_lea.sflag [#allocation3], %s172
          %s174 = sand.u32 %s27, 1
          %s175 = smul.addr %s174, 8
          %s176 = scalar_lea.vmem [#allocation2], %s175
          %178 = vsyncadd %s173, 0
          %s179 = smul.addr %s17, 8
          %s180 = scalar_lea.hbm %s0, %s179
          %s182 = sshll.u32 %s180, 4
          %s183 = int_to_ptr.hbm [resolvable:$true] %s182
          %s184 = sshll.u32 %s176, 4
          %s185 = int_to_ptr.vmem [resolvable:$true] %s184
          %187 = dma.hbm_to_vmem [thread:$0]  %s183, 128, %s185, %s173
        $region32: #{tpu_custom_call.1} parent=27 // pred_fallthru
          _
      $region28: #{tpu_custom_call.1} parent=5 // pred_fallthru
        _
      %p188 = scmp.le.s32.totalorder 1, %s17
      %p189 = scmp.lt.s32.totalorder %s17, 3
      %p190 = pnand %p188, %p189
      %p191 = pneg %p190
      // Predicated region
      $region33: #{tpu_custom_call.1} parent=5 // pred_check
        _
      $region34: #{tpu_custom_call.1} parent=5 // pred_check_branch
        %193 = sbr.rel (%p190) target = $region36
      $region35: #{tpu_custom_call.1} parent=5 // pred_region
        %s194 = ssub.s32 %s17, 1
        %s195 = sand.u32 %s30, 1
        %s196 = scalar_lea.sflag [#allocation3], %s195
        %s197 = sand.u32 %s30, 1
        %s198 = smul.addr %s197, 8
        %s199 = scalar_lea.vmem [#allocation2], %s198
        // Predicated region
        $region37: #{tpu_custom_call.1} parent=35 // pred_check
          %p200 = pneg %p43
        $region38: #{tpu_custom_call.1} parent=35 // pred_check_branch
          %202 = sbr.rel (%p200) target = $region40
        $region39: #{tpu_custom_call.1} parent=35 // pred_region
          %204 = dma.done %s196, 128
        $region40: #{tpu_custom_call.1} parent=35 // pred_fallthru
          _
        // Predicated region
        $region41: #{tpu_custom_call.1} parent=35 // pred_check
          %p205 = pneg %p64
        $region42: #{tpu_custom_call.1} parent=35 // pred_check_branch
          %207 = sbr.rel (%p205) target = $region44
        $region43: #{tpu_custom_call.1} parent=35 // pred_region
          %209 = dma.done [#allocation6], 128
        $region44: #{tpu_custom_call.1} parent=35 // pred_fallthru
          _
        %s210 = sand.u32 %s30, 1
        %s211 = scalar_lea.sflag [#allocation3], %s210
        %s212 = sand.u32 %s30, 1
        %s213 = smul.addr %s212, 8
        %s214 = scalar_lea.vmem [#allocation2], %s213
        %p215 = pneg %p43
        %p216 = pneg %p40
        %p217 = pneg %p64
        %p218 = pneg %p61
        %p219 = pneg %p85
        %p220 = pneg %p82
        %p221 = pneg %p106
        %p222 = pneg %p103
        %p223 = pneg %p132
        %p224 = pneg %p129
        %s225 = sand.u32 %s119, 1
        %s226 = scalar_lea.sflag [#allocation4], %s225
        %s227 = sand.u32 %s119, 1
        %s228 = smul.addr %s227, 8
        %s229 = scalar_lea.vmem [#allocation7], %s228
        %v230 = vld [vmem:[%s199] sm:$0xff]
        %v231 = vld [vmem:[#allocation5] sm:$0xff]
        %v232 = vadd.f32 %v230, %v231
        %vm233 = vcmask 261120
        %v234 = vsel %vm233, %v232, 0.0
        %235 = vadd.xlane.f32.xlu0 %v234
        %v236 = vpop.xlane.xlu0 %235
        %v237 = vrcp.pop 32.0
        %v238 = vmul.f32 32.0, %v237
        %v239 = vsub.f32 1.0, %v238
        %v240 = vmul.f32 %v237, %v239
        %v241 = vadd.f32 %v237, %v240
        %vm242 = vweird.f32 %v237
        %v243 = vsel %vm242, %v237, %v241
        %v244 = vmul.f32 %v236, %v243
        %v245 = vsub.f32 %v232, %v244
        %v246 = vmul.f32 %v245, %v245
        %v247 = vsel %vm233, %v246, 0.0
        %248 = vadd.xlane.f32.xlu0 %v247
        %v249 = vpop.xlane.xlu0 %248
        %v250 = vmul.f32 %v249, %v243
        %v251 = vadd.f32 %v250, 1e-12
        %v252 = vrsqrt.pop %v251
        %v253 = vmul.f32 %v252, %v251
        %v254 = vmul.f32 %v253, %v252
        %v255 = vmul.f32 0.5, %v254
        %v256 = vsub.f32 1.5, %v255
        %v257 = vmul.f32 %v252, %v256
        %vm258 = vweird.f32 %v251
        %vm259 = vweird.f32 %v252
        %vm260 = vmor %vm258, %vm259
        %v261 = vsel %vm260, %v252, %v257
        %v262 = vmul.f32 %v245, %v261
        %v263 = vld [vmem:[%s2] sm:$0x1]
        %v265 = vperm.slane %v263, 0
        %v267 = vmul.f32 %v262, %v265
        %v268 = vld [vmem:[%s3] sm:$0x1]
        %v270 = vperm.slane %v268, 0
        %v272 = vadd.f32 %v267, %v270
        %273 = vst.msk [vmem:[%s229] sm:$0xff] %vm233, %v272
        %s274 = sand.u32 %s119, 1
        %s275 = scalar_lea.sflag [#allocation4], %s274
        %s276 = sand.u32 %s119, 1
        %s277 = smul.addr %s276, 8
        %s278 = scalar_lea.vmem [#allocation7], %s277
        // Predicated region
        $region45: #{tpu_custom_call.1} parent=35 // pred_check
          %p279 = pneg %p129
        $region46: #{tpu_custom_call.1} parent=35 // pred_check_branch
          %281 = sbr.rel (%p279) target = $region48
        $region47: #{tpu_custom_call.1} parent=35 // pred_region
          %283 = vsyncadd %s275, 0
          %s284 = smul.addr %s22, 8
          %s285 = scalar_lea.hbm %s4, %s284
          %s287 = sshll.u32 %s278, 4
          %s288 = int_to_ptr.vmem [resolvable:$true] %s287
          %s289 = sshll.u32 %s285, 4
          %s290 = int_to_ptr.hbm [resolvable:$true] %s289
          %292 = dma.vmem_to_hbm [thread:$0]  %s288, 128, %s290, %s275
        $region48: #{tpu_custom_call.1} parent=35 // pred_fallthru
          _
      $region36: #{tpu_custom_call.1} parent=5 // pred_fallthru
        _
      %p293 = scmp.le.s32.totalorder 2, %s17
      // Predicated region
      $region49: #{tpu_custom_call.1} parent=5 // pred_check
        %p294 = pneg %p293
      $region50: #{tpu_custom_call.1} parent=5 // pred_check_branch
        %296 = sbr.rel (%p294) target = $region52
      $region51: #{tpu_custom_call.1} parent=5 // pred_region
        %s297 = ssub.s32 %s17, 2
        // Predicated region
        $region53: #{tpu_custom_call.1} parent=51 // pred_check
          %p298 = pneg %p135
        $region54: #{tpu_custom_call.1} parent=51 // pred_check_branch
          %300 = sbr.rel (%p298) target = $region56
        $region55: #{tpu_custom_call.1} parent=51 // pred_region
          %s301 = sand.u32 %s120, 1
          %s302 = scalar_lea.sflag [#allocation4], %s301
          %s303 = sand.u32 %s120, 1
          %s304 = smul.addr %s303, 8
          %s305 = scalar_lea.vmem [#allocation7], %s304
          %307 = dma.done %s302, 128
        $region56: #{tpu_custom_call.1} parent=51 // pred_fallthru
          _
      $region52: #{tpu_custom_call.1} parent=5 // pred_fallthru
        _
    $region6: #{tpu_custom_call.1} parent=1 // loop_footer
      %s21 = sadd.s32 1, %s17
    $region7: #{tpu_custom_call.1} parent=1 // loop_footer_branch
      %16 = sbr.rel target = $region3
    $region8: #{tpu_custom_call.1} parent=1 // loop_exit
      _
    %308 = vsyncpa [#allocation3], 1
    %s309 = scalar_lea.sflag [#allocation3], 1
    %310 = vsyncpa %s309, 1
    %311 = vsyncpa [#allocation6], 1
    %312 = vsyncpa [#allocation4], 1
    %s313 = scalar_lea.sflag [#allocation4], 1
    %314 = vsyncpa %s313, 1

</llo_original>
